<compile_context>
chip_gen: v5e
topology: v5e:2x2
jax: 0.10.0
libtpu: 0.0.40
codegen_flags: <defaults>
</compile_context>

<pallas_src>
import functools

import jax
import jax.numpy as jnp
from jax.experimental import pallas as pl
from jax.experimental.pallas import tpu as pltpu


def _round_up(x, m):
    return (x + m - 1) // m * m


def _vmem_tile_bytes(rows, cols, dtype):
    """VMEM footprint of one (rows, cols) tile incl. (sublane, 128) layout padding."""
    itemsize = jnp.dtype(dtype).itemsize
    sublane = max(8, 32 // itemsize)  # f32 -> 8, bf16 -> 16, int8 -> 32
    return _round_up(max(rows, 1), sublane) * _round_up(max(cols, 1), 128) * itemsize


def _apply_activation(y, activation):
    if activation == "sigmoid":
        return jax.nn.sigmoid(y)
    if activation == "tanh":
        return jnp.tanh(y)
    if activation == "relu":
        return jnp.maximum(y, 0.0)
    return y  # activation is None -> plain linear layer (default SingleOutput)


# ----------------------------------------------------------------------------
# Fast path: whole weight/bias resident in VMEM; grid iterates batch tiles only.
# ----------------------------------------------------------------------------
def _fused_kernel(x_ref, w_ref, b_ref, o_ref, *, activation):
    # x_ref: (TM, IN), w_ref: (IN, OUT), b_ref: (1, OUT), o_ref: (TM, OUT)
    y = jnp.dot(x_ref[...], w_ref[...], preferred_element_type=jnp.float32)
    y = y + b_ref[...]
    o_ref[...] = _apply_activation(y, activation).astype(o_ref.dtype)


# ----------------------------------------------------------------------------
# Fallback: K-tiled reduction accumulating directly in the resident f32 output.
# ----------------------------------------------------------------------------
def _ktiled_kernel(x_ref, w_ref, b_ref, o_ref, *, activation):
    # x_ref: (TM, TK), w_ref: (TK, TN), b_ref: (1, TN), o_ref: (TM, TN) float32
    k = pl.program_id(2)

    @pl.when(k == 0)
    def _():
        o_ref[...] = jnp.zeros_like(o_ref)

    o_ref[...] += jnp.dot(x_ref[...], w_ref[...],
                          preferred_element_type=jnp.float32)

    @pl.when(k == pl.num_programs(2) - 1)
    def _():
        o_ref[...] = _apply_activation(o_ref[...] + b_ref[...], activation)


def single_output_forward(hidden, weight, bias, activation=None):
    """Forward pass of SingleOutput.

    hidden: (B, IN)
    weight: (IN, OUT)  (transpose of torch nn.Linear.weight)
    bias:   (OUT,)
    """
    B, IN = hidden.shape
    IN_w, OUT = weight.shape
    assert IN == IN_w, (IN, IN_w)

    itemsize = jnp.dtype(hidden.dtype).itemsize
    sublane = max(8, 32 // itemsize)  # min sublane multiple for this dtype

    b2 = bias.reshape(1, OUT)

    # Per-TC VMEM budgets, conservative for v7x (64 MiB physical per TC).
    WEIGHT_RESIDENT_BUDGET = 16 << 20   # single resident copy, layout-padded
    TOTAL_VMEM_BUDGET = 40 << 20        # incl. 2x buffering of every operand

    w_vmem = _vmem_tile_bytes(IN, OUT, weight.dtype)
    b_vmem = _vmem_tile_bytes(1, OUT, bias.dtype)

    # ---------------- fast (resident-weight) path ----------------
    if w_vmem <= WEIGHT_RESIDENT_BUDGET:
        tm_candidates = []
        if B <= 512:
            tm_candidates.append(B)  # full-dim batch block -> no padding at all
        for t in (512, 256, 128, 64, 32, 16, 8):
            if t % sublane == 0 and t < B:
                tm_candidates.append(t)

        chosen_tm = None
        for tm in tm_candidates:
            total = 2 * (w_vmem + b_vmem
                         + _vmem_tile_bytes(tm, IN, hidden.dtype)
                         + _vmem_tile_bytes(tm, OUT, hidden.dtype))
            if total <= TOTAL_VMEM_BUDGET:
                chosen_tm = tm
                break

        if chosen_tm is not None:
            TM = chosen_tm
            B_pad = _round_up(B, TM)
            x = hidden
            if B_pad != B:
                x = jnp.pad(x, ((0, B_pad - B), (0, 0)))

            needed = 2 * (w_vmem + b_vmem
                          + _vmem_tile_bytes(TM, IN, hidden.dtype)
                          + _vmem_tile_bytes(TM, OUT, hidden.dtype))
            vmem_limit = max(16 << 20, min(needed + (4 << 20), 48 << 20))

            out = pl.pallas_call(
                functools.partial(_fused_kernel, activation=activation),
                out_shape=jax.ShapeDtypeStruct((B_pad, OUT), hidden.dtype),
                grid=(B_pad // TM,),
                in_specs=[
                    pl.BlockSpec((TM, IN), lambda i: (i, 0)),
                    # Constant index_maps -> weight/bias fetched from HBM once
                    # and kept resident across all batch tiles.
                    pl.BlockSpec((IN, OUT), lambda i: (0, 0)),
                    pl.BlockSpec((1, OUT), lambda i: (0, 0)),
                ],
                out_specs=pl.BlockSpec((TM, OUT), lambda i: (i, 0)),
                compiler_params=pltpu.CompilerParams(
                    dimension_semantics=("parallel",),
                    vmem_limit_bytes=int(vmem_limit),
                ),
            )(x, weight, b2)

            return out if B_pad == B else out[:B]

    # ---------------- fallback: K-tiled reduction path ----------------
    # (only reached when the weight itself is too large to keep resident)
    TM = min(256, _round_up(B, sublane))
    TN = min(256, _round_up(OUT, 128))
    TK = min(512, _round_up(IN, 128))

    B_pad = _round_up(B, TM)
    IN_pad = _round_up(IN, TK)
    OUT_pad = _round_up(OUT, TN)

    x = hidden
    if (B_pad, IN_pad) != (B, IN):
        x = jnp.pad(x, ((0, B_pad - B), (0, IN_pad - IN)))
    w = weight
    if (IN_pad, OUT_pad) != (IN, OUT):
        w = jnp.pad(w, ((0, IN_pad - IN), (0, OUT_pad - OUT)))
    bp = jnp.pad(bias, (0, OUT_pad - OUT)).reshape(1, OUT_pad)

    grid = (B_pad // TM, OUT_pad // TN, IN_pad // TK)  # reduction axis last

    needed = 2 * (_vmem_tile_bytes(TM, TK, hidden.dtype)
                  + _vmem_tile_bytes(TK, TN, weight.dtype)
                  + _vmem_tile_bytes(1, TN, bias.dtype)
                  + _vmem_tile_bytes(TM, TN, jnp.float32))
    vmem_limit = max(16 << 20, min(needed + (4 << 20), 48 << 20))

    out_padded = pl.pallas_call(
        functools.partial(_ktiled_kernel, activation=activation),
        # Accumulate in f32 directly in the output block (no scratch); cast after.
        out_shape=jax.ShapeDtypeStruct((B_pad, OUT_pad), jnp.float32),
        grid=grid,
        in_specs=[
            pl.BlockSpec((TM, TK), lambda i, j, k: (i, k)),
            pl.BlockSpec((TK, TN), lambda i, j, k: (k, j)),
            pl.BlockSpec((1, TN), lambda i, j, k: (0, j)),
        ],
        out_specs=pl.BlockSpec((TM, TN), lambda i, j, k: (i, j)),
        compiler_params=pltpu.CompilerParams(
            dimension_semantics=("parallel", "parallel", "arbitrary"),
            vmem_limit_bytes=int(vmem_limit),
        ),
    )(x, w, bp)

    return out_padded[:B, :OUT].astype(hidden.dtype)


if __name__ == "__main__":
    # SingleOutput(previous_layer_size=32, output_size=16)
    key = jax.random.PRNGKey(0)
    k_x, k_w, k_b = jax.random.split(key, 3)

    B, IN, OUT = 8, 32, 16

    hidden = jax.random.normal(k_x, (B, IN), dtype=jnp.float32)
    # Mimic nn.Linear's uniform(-1/sqrt(IN), 1/sqrt(IN)) init, deterministically.
    bound = 1.0 / (IN ** 0.5)
    weight = jax.random.uniform(k_w, (IN, OUT), minval=-bound, maxval=bound,
                                dtype=jnp.float32)
    bias = jax.random.uniform(k_b, (OUT,), minval=-bound, maxval=bound,
                              dtype=jnp.float32)

    ref = hidden @ weight + bias

    # No-activation path (default SingleOutput).
    out = jax.block_until_ready(single_output_forward(hidden, weight, bias,
                                                      activation=None))
    assert out.shape == (B, OUT)
    assert jnp.allclose(out, ref, atol=1e-5, rtol=1e-5)

    # Activation path (SingleOutput with nn.Sigmoid()).
    out_sig = jax.block_until_ready(
        single_output_forward(hidden, weight, bias, activation="sigmoid"))
    assert jnp.allclose(out_sig, jax.nn.sigmoid(ref), atol=1e-5, rtol=1e-5)

    # Activation path (SingleOutput with nn.Tanh()).
    out_tanh = jax.block_until_ready(
        single_output_forward(hidden, weight, bias, activation="tanh"))
    assert jnp.allclose(out_tanh, jnp.tanh(ref), atol=1e-5, rtol=1e-5)

    print("KERNEL_OK")
</pallas_src>

<mosaic_0001>
module attributes {stable_mosaic.version = 11 : i64} {
  func.func @_fused_kernel(%arg0: i32, %arg1: memref<8x32xf32, #tpu.memory_space<vmem>>, %arg2: memref<32x16xf32, #tpu.memory_space<vmem>>, %arg3: memref<1x16xf32, #tpu.memory_space<vmem>>, %arg4: memref<8x16xf32, #tpu.memory_space<vmem>>) attributes {dimension_semantics = [#tpu.dimension_semantics<parallel>], iteration_bounds = array<i64: 1>, scalar_prefetch = 0 : i64, scratch_operands = 0 : i64, tpu.core_type = #tpu.core_type<tc>, window_params = [{transform_indices = @transform_0, window_bounds = array<i64: 8, 32>}, {pipeline_mode = #tpu.pipeline_mode<synchronous>, transform_indices = @transform_1, window_bounds = array<i64: 32, 16>}, {pipeline_mode = #tpu.pipeline_mode<synchronous>, transform_indices = @transform_2, window_bounds = array<i64: 1, 16>}, {transform_indices = @transform_3, window_bounds = array<i64: 8, 16>}]} {
    %c0 = arith.constant 0 : index
    %c0_0 = arith.constant 0 : index
    %0 = vector.load %arg1[%c0, %c0_0] : memref<8x32xf32, #tpu.memory_space<vmem>>, vector<8x32xf32>
    %c0_1 = arith.constant 0 : index
    %c0_2 = arith.constant 0 : index
    %1 = vector.load %arg2[%c0_1, %c0_2] : memref<32x16xf32, #tpu.memory_space<vmem>>, vector<32x16xf32>
    %cst = arith.constant dense<0.000000e+00> : vector<8x16xf32>
    %2 = tpu.matmul %0, %1, %cst {dimension_numbers = #tpu.dot_dimension_numbers<[1], [0], [0], [1], [0, 0, 1, 1], [], []>} : vector<8x32xf32>, vector<32x16xf32>, vector<8x16xf32> -> vector<8x16xf32>
    %c0_3 = arith.constant 0 : index
    %c0_4 = arith.constant 0 : index
    %3 = vector.load %arg3[%c0_3, %c0_4] : memref<1x16xf32, #tpu.memory_space<vmem>>, vector<1x16xf32>
    %4 = vector.broadcast %3 : vector<1x16xf32> to vector<8x16xf32>
    %5 = arith.addf %2, %4 : vector<8x16xf32>
    %c0_5 = arith.constant 0 : index
    %c0_6 = arith.constant 0 : index
    %6 = vector.load %arg4[%c0_5, %c0_6] : memref<8x16xf32, #tpu.memory_space<vmem>>, vector<8x16xf32>
    tpu.vector_store %arg4[%c0_5, %c0_6], %5 {strides = array<i32>} : memref<8x16xf32, #tpu.memory_space<vmem>>, vector<8x16xf32>,
    return
  }
  func.func @transform_0(%arg0: i32) -> (i32, i32) {
    %c0_i32 = arith.constant 0 : i32
    %c0_i32_0 = arith.constant 0 : i32
    return %arg0, %c0_i32 : i32, i32
  }
  func.func @transform_1(%arg0: i32) -> (i32, i32) {
    %c0_i32 = arith.constant 0 : i32
    %c0_i32_0 = arith.constant 0 : i32
    %c0_i32_1 = arith.constant 0 : i32
    return %c0_i32, %c0_i32_0 : i32, i32
  }
  func.func @transform_2(%arg0: i32) -> (i32, i32) {
    %c0_i32 = arith.constant 0 : i32
    %c0_i32_0 = arith.constant 0 : i32
    %c0_i32_1 = arith.constant 0 : i32
    return %c0_i32, %c0_i32_0 : i32, i32
  }
  func.func @transform_3(%arg0: i32) -> (i32, i32) {
    %c0_i32 = arith.constant 0 : i32
    %c0_i32_0 = arith.constant 0 : i32
    return %arg0, %c0_i32 : i32, i32
  }
}

</mosaic_0001>

<llo_original>
// kernel: tpu_custom_call.1
$region0: #{tpu_custom_call.1}
  #allocation0 [shape = 'u32[]', space=smem, size = 0x4, offset = 0x4, fixed_abs, tag = 'smem constant byte address 0x4 - core index']
  #allocation1 [shape = 'u32[72,128]{1,0:T(1,128)}', space=vmem, size = 0x9000, scoped, tag = 'internal scratch']
  %s0 = inlined_call_operand.vmem [shape: f32[8,32], index: 0, kind: input, shape index: {}]
  %s1 = inlined_call_operand.vmem [shape: f32[32,16], index: 1, kind: input, shape index: {}]
  %s2 = inlined_call_operand.vmem [shape: f32[1,16], index: 2, kind: input, shape index: {}]
  %s3 = inlined_call_operand.hbm [shape: f32[8,16], index: 3, kind: output, shape index: {}]
  %s4 = sld [smem:[#allocation0]]
  $region22: #{tpu_custom_call.1} parent=0
    _
  %s6 = ssub.s32 1, %s4
  %s7 = scalar_select 0, %s6, %s4
  $region1: #{tpu_custom_call.1} parent=0
    #allocation2 [shape = 'u8[4096]{0}', space=vmem, size = 0x1000, scoped, tag = 'output window, operand 0, single buffered']
    #allocation3 [shape = 's32[1]{0}', space=sflag, size = 0x4, scoped, tag = 'scoped memory for tpu_custom_call.1']
    %8 = vsyncpa [#allocation3], 0
    // Predicated region
    $region2: #{tpu_custom_call.1} parent=1 // pred_check
      _
    $region3: #{tpu_custom_call.1} parent=1 // pred_check_branch
      %10 = sbr.rel (0) target = $region5
    $region4: #{tpu_custom_call.1} parent=1 // pred_region
      _
    $region5: #{tpu_custom_call.1} parent=1 // pred_fallthru
      _
    // Predicated region
    $region6: #{tpu_custom_call.1} parent=1 // pred_check
      _
    $region7: #{tpu_custom_call.1} parent=1 // pred_check_branch
      %12 = sbr.rel (0) target = $region9
    $region8: #{tpu_custom_call.1} parent=1 // pred_region
      _
    $region9: #{tpu_custom_call.1} parent=1 // pred_fallthru
      _
    // Predicated region
    $region10: #{tpu_custom_call.1} parent=1 // pred_check
      _
    $region11: #{tpu_custom_call.1} parent=1 // pred_check_branch
      %14 = sbr.rel (0) target = $region13
    $region12: #{tpu_custom_call.1} parent=1 // pred_region
      _
    $region13: #{tpu_custom_call.1} parent=1 // pred_fallthru
      _
    %v15 = vld [vmem:[%s0] sm:$0xff]
    %v16 = vld [vmem:[%s1] sm:$0xff]
    %v17 = vld [vmem:[%s1 + $0x8] sm:$0xff]
    %v18 = vld [vmem:[%s1 + $0x10] sm:$0xff]
    %v19 = vld [vmem:[%s1 + $0x18] sm:$0xff]
    %v20 = vld [vmem:[%s2] sm:$0x1]
    %v22 = vperm.slane %v20, 0
    %vm24 = vcmask 261120
    %v26 = vsel %vm24, %v15, 0
    %28 = vmatpush.msra.mxu0 0.0
    %29 = vmatpush.msra.mxu0 0.0
    %30 = vmatpush.msra.mxu0 0.0
    %31 = vmatpush.msra.mxu0 0.0
    %32 = vmatpush.msra.mxu0 0.0
    %33 = vmatpush.msra.mxu0 0.0
    %34 = vmatpush.msra.mxu0 0.0
    %35 = vmatpush.msra.mxu0 0.0
    %36 = vmatpush.msra.mxu0 0.0
    %37 = vmatpush.msra.mxu0 0.0
    %38 = vmatpush.msra.mxu0 0.0
    %39 = vmatpush.msra.mxu0 0.0
    %40 = vmatpush.msra.mxu0 %v19
    %41 = vmatpush.msra.mxu0 %v18
    %42 = vmatpush.msra.mxu0 %v17
    %43 = vmatpush.msra.mxu0 %v16
    %44 = vmatmul.f32.gmra.mxu0 %v26
    %v45 = vpop.f32.mrf.mxu0
    %v46 = vadd.f32 %v22, %v45
    %47 = vdwg.mxu0
    %vm48 = vcmask 130048
    %49 = vst.msk [vmem:[#allocation2] sm:$0xff] %vm48, %v46
    // Predicated region
    $region14: #{tpu_custom_call.1} parent=1 // pred_check
      _
    $region15: #{tpu_custom_call.1} parent=1 // pred_check_branch
      %51 = sbr.rel (0) target = $region17
    $region16: #{tpu_custom_call.1} parent=1 // pred_region
      %53 = vsyncadd [#allocation3], 0
      %s55 = sshll.u32 [#allocation2], 4
      %s56 = int_to_ptr.vmem [resolvable:$true] %s55
      %s57 = sshll.u32 %s3, 4
      %s58 = int_to_ptr.hbm [resolvable:$true] %s57
      %60 = dma.vmem_to_hbm [thread:$0]  %s56, 128, %s58, [#allocation3]
    $region17: #{tpu_custom_call.1} parent=1 // pred_fallthru
      _
    // Predicated region
    $region18: #{tpu_custom_call.1} parent=1 // pred_check
      _
    $region19: #{tpu_custom_call.1} parent=1 // pred_check_branch
      %62 = sbr.rel (0) target = $region21
    $region20: #{tpu_custom_call.1} parent=1 // pred_region
      %64 = dma.done [#allocation3], 128
    $region21: #{tpu_custom_call.1} parent=1 // pred_fallthru
      _
    %65 = vsyncpa [#allocation3], 1

</llo_original>
